<compile_context>
chip_gen: v5e
topology: v5e:2x2
jax: 0.10.0
libtpu: 0.0.40
codegen_flags: <defaults>
</compile_context>

<pallas_src>
import jax
import jax.numpy as jnp
from jax.experimental import pallas as pl
from jax.experimental.pallas import tpu as pltpu

_LANE = 128


def _make_pool_kernel(t_hw, n_chunks, tail_lanes, needs_mask):
    """Build kernel producing per-row [sum, max] over the HW (lane) axis.

    Blocks: x_ref (t_r, t_hw); sum_out / max_out (t_r, 1).
    Scratch: sum_acc / max_acc (t_r, 128) f32 (lane-shaped running partials).
    Grid: (num_row_blocks, num_hw_blocks), HW innermost ("arbitrary").
    """

    def accumulate(x_ref, sum_acc, max_acc, valid_lanes):
        # valid_lanes is a *static* Python int: number of valid lanes in this
        # HW tile.  Chunks entirely past it are skipped; the single boundary
        # chunk is masked for BOTH sum and max (OOB block data is unspecified).
        for j in range(n_chunks):
            start = j * _LANE
            if start >= valid_lanes:
                break
            chunk = x_ref[:, pl.ds(start, _LANE)].astype(jnp.float32)
            if start + _LANE > valid_lanes:
                lane = jax.lax.broadcasted_iota(jnp.int32, chunk.shape, 1)
                valid = lane < (valid_lanes - start)
                c_sum = jnp.where(valid, chunk, 0.0)
                c_max = jnp.where(valid, chunk, -jnp.inf)
            else:
                c_sum = chunk
                c_max = chunk
            sum_acc[...] += c_sum
            max_acc[...] = jnp.maximum(max_acc[...], c_max)

    def kernel(x_ref, sum_out_ref, max_out_ref, sum_acc, max_acc):
        k = pl.program_id(1)
        last = pl.num_programs(1) - 1

        @pl.when(k == 0)
        def _():
            sum_acc[...] = jnp.zeros_like(sum_acc)
            max_acc[...] = jnp.full_like(max_acc, -jnp.inf)

        if needs_mask:
            # Only the last HW tile pays for mask construction.
            @pl.when(k == last)
            def _():
                accumulate(x_ref, sum_acc, max_acc, tail_lanes)

            @pl.when(k != last)
            def _():
                accumulate(x_ref, sum_acc, max_acc, t_hw)
        else:
            accumulate(x_ref, sum_acc, max_acc, t_hw)

        @pl.when(k == last)
        def _():
            # Single cross-lane reduce per row block; straight (t_r, 1) stores
            # (no concatenate / transpose in the epilogue).
            sum_out_ref[...] = jnp.sum(sum_acc[...], axis=-1, keepdims=True)
            max_out_ref[...] = jnp.max(max_acc[...], axis=-1, keepdims=True)

    return kernel


@jax.jit
def channel_attention(x, w1, w2):
    """x: (B, C, H, W) float; w1: (hidden, C); w2: (C, hidden). -> (B, C, 1, 1)."""
    B, C, H, W = x.shape
    HW = H * W
    R = B * C
    elem = x.dtype.itemsize

    # --- row tile: full sublane occupancy regardless of C, and a second
    #     "parallel" grid axis independent of B (megacore lever on v7x).
    t_r = min(R, 128)                              # mult of 8, or == full dim R

    # --- lane tile: target ~4 MiB per input block (double-buffered 8 MiB fits
    #     every generation's scoped-VMEM default); cap the static chunk unroll.
    hw128 = pl.cdiv(HW, _LANE) * _LANE
    target_bytes = 4 * 1024 * 1024
    max_lanes = max(_LANE, (target_bytes // max(1, t_r * elem)) // _LANE * _LANE)
    max_unroll_lanes = 64 * _LANE                  # <= 64 chunks per step
    t_hw = min(hw128, max_lanes, max_unroll_lanes)

    num_r = pl.cdiv(R, t_r)
    num_k = pl.cdiv(HW, t_hw)
    n_chunks = t_hw // _LANE
    tail_lanes = HW - (num_k - 1) * t_hw           # static valid lanes of last tile
    needs_mask = tail_lanes != t_hw

    x2 = x.reshape(R, HW)                          # pure view: no pad, no HBM copy

    kernel = _make_pool_kernel(t_hw, n_chunks, tail_lanes, needs_mask)

    sum_r, max_r = pl.pallas_call(
        kernel,
        out_shape=(jax.ShapeDtypeStruct((R, 1), jnp.float32),
                   jax.ShapeDtypeStruct((R, 1), jnp.float32)),
        grid_spec=pltpu.PrefetchScalarGridSpec(
            num_scalar_prefetch=0,
            grid=(num_r, num_k),
            in_specs=[pl.BlockSpec((t_r, t_hw), lambda r, k: (r, k))],
            out_specs=[pl.BlockSpec((t_r, 1), lambda r, k: (r, 0)),
                       pl.BlockSpec((t_r, 1), lambda r, k: (r, 0))],
            scratch_shapes=[
                pltpu.VMEM((t_r, _LANE), jnp.float32),   # running partial sums
                pltpu.VMEM((t_r, _LANE), jnp.float32),   # running partial maxes
            ],
        ),
        compiler_params=pltpu.CompilerParams(
            dimension_semantics=("parallel", "arbitrary"),
        ),
        cost_estimate=pl.CostEstimate(
            flops=2 * R * HW,
            transcendentals=0,
            bytes_accessed=R * HW * elem + 2 * R * 4,
        ),
    )(x2)

    # --- tiny shared-MLP + sigmoid epilogue: hidden = C // (C//2) = 2, so this
    #     is a handful of FLOPs — leave it to XLA (no MXU win possible).
    avg = sum_r.reshape(B, C) * (1.0 / HW)         # (B, C) f32
    mx = max_r.reshape(B, C)                       # (B, C) f32
    w1f = w1.astype(jnp.float32)                   # (hidden, C)
    w2f = w2.astype(jnp.float32)                   # (C, hidden)

    def mlp(v):                                    # v: (B, C)
        return jnp.maximum(v @ w1f.T, 0.0) @ w2f.T

    att = jax.nn.sigmoid(mlp(avg) + mlp(mx))       # (B, C)
    return att.reshape(B, C, 1, 1).astype(x.dtype)


def channel_attention_ref(x, w1, w2):
    """Pure-JAX reference matching the PyTorch forward."""
    B, C, H, W = x.shape
    avg = jnp.mean(x, axis=(2, 3))                 # (B, C)
    mx = jnp.max(x, axis=(2, 3))                   # (B, C)

    def mlp(v):
        return jnp.maximum(v @ w1.T, 0.0) @ w2.T

    out = jax.nn.sigmoid(mlp(avg) + mlp(mx))
    return out.reshape(B, C, 1, 1)


if __name__ == "__main__":
    B, C, H, W = 2, 4, 16, 16
    ratio = C // 2
    hidden = C // ratio  # == 2

    key = jax.random.PRNGKey(0)
    kx, k1, k2 = jax.random.split(key, 3)

    x = jax.random.normal(kx, (B, C, H, W), dtype=jnp.float32)
    # PyTorch Conv2d weight (out, in, 1, 1) -> squeezed to (out, in).
    w1 = jax.random.normal(k1, (hidden, C), dtype=jnp.float32) * 0.5
    w2 = jax.random.normal(k2, (C, hidden), dtype=jnp.float32) * 0.5

    out = jax.block_until_ready(channel_attention(x, w1, w2))
    ref = channel_attention_ref(x, w1, w2)
    assert out.shape == (B, C, 1, 1)
    assert jnp.allclose(out, ref, atol=1e-5, rtol=1e-5), (out, ref)

    # Also exercise the ragged / in-kernel-masked path (HW not a multiple of 128).
    x2 = jax.random.normal(kx, (B, C, 15, 15), dtype=jnp.float32)
    out2 = jax.block_until_ready(channel_attention(x2, w1, w2))
    ref2 = channel_attention_ref(x2, w1, w2)
    assert jnp.allclose(out2, ref2, atol=1e-5, rtol=1e-5), (out2, ref2)

    print("KERNEL_OK")
</pallas_src>

<mosaic_0001>
module attributes {stable_mosaic.version = 11 : i64} {
  func.func @kernel(%arg0: i32, %arg1: i32, %arg2: memref<8x256xf32, #tpu.memory_space<vmem>>, %arg3: memref<8x1xf32, #tpu.memory_space<vmem>>, %arg4: memref<8x1xf32, #tpu.memory_space<vmem>>, %arg5: memref<8x128xf32, #tpu.memory_space<vmem>>, %arg6: memref<8x128xf32, #tpu.memory_space<vmem>>) attributes {dimension_semantics = [#tpu.dimension_semantics<parallel>, #tpu.dimension_semantics<arbitrary>], iteration_bounds = array<i64: 1, 1>, scalar_prefetch = 0 : i64, scratch_operands = 2 : i64, tpu.core_type = #tpu.core_type<tc>, window_params = [{transform_indices = @transform_0, window_bounds = array<i64: 8, 256>}, {transform_indices = @transform_1, window_bounds = array<i64: 8, 1>}, {transform_indices = @transform_2, window_bounds = array<i64: 8, 1>}]} {
    %c0_i32 = arith.constant 0 : i32
    %0 = arith.cmpi eq, %arg1, %c0_i32 : i32
    %1 = arith.extui %0 : i1 to i32
    %c0_i32_0 = arith.constant 0 : i32
    %2 = arith.cmpi ne, %1, %c0_i32_0 : i32
    scf.if %2 {
      %cst = arith.constant 0.000000e+00 : f32
      %20 = vector.broadcast %cst : f32 to vector<8x128xf32>
      %c0_21 = arith.constant 0 : index
      %c0_22 = arith.constant 0 : index
      %21 = vector.load %arg5[%c0_21, %c0_22] : memref<8x128xf32, #tpu.memory_space<vmem>>, vector<8x128xf32>
      tpu.vector_store %arg5[%c0_21, %c0_22], %20 {strides = array<i32>} : memref<8x128xf32, #tpu.memory_space<vmem>>, vector<8x128xf32>,
      %cst_23 = arith.constant 0xFF800000 : f32
      %22 = vector.broadcast %cst_23 : f32 to vector<8x128xf32>
      %c0_24 = arith.constant 0 : index
      %c0_25 = arith.constant 0 : index
      %23 = vector.load %arg6[%c0_24, %c0_25] : memref<8x128xf32, #tpu.memory_space<vmem>>, vector<8x128xf32>
      tpu.vector_store %arg6[%c0_24, %c0_25], %22 {strides = array<i32>} : memref<8x128xf32, #tpu.memory_space<vmem>>, vector<8x128xf32>,
    } else {
    }
    %c0 = arith.constant 0 : index
    %c0_1 = arith.constant 0 : index
    %3 = vector.load %arg2[%c0, %c0_1] : memref<8x256xf32, #tpu.memory_space<vmem>>, vector<8x128xf32>
    %c0_2 = arith.constant 0 : index
    %c0_3 = arith.constant 0 : index
    %4 = vector.load %arg5[%c0_2, %c0_3] : memref<8x128xf32, #tpu.memory_space<vmem>>, vector<8x128xf32>
    %5 = arith.addf %4, %3 : vector<8x128xf32>
    %c0_4 = arith.constant 0 : index
    %c0_5 = arith.constant 0 : index
    %6 = vector.load %arg5[%c0_4, %c0_5] : memref<8x128xf32, #tpu.memory_space<vmem>>, vector<8x128xf32>
    tpu.vector_store %arg5[%c0_4, %c0_5], %5 {strides = array<i32>} : memref<8x128xf32, #tpu.memory_space<vmem>>, vector<8x128xf32>,
    %c0_6 = arith.constant 0 : index
    %c0_7 = arith.constant 0 : index
    %7 = vector.load %arg6[%c0_6, %c0_7] : memref<8x128xf32, #tpu.memory_space<vmem>>, vector<8x128xf32>
    %8 = arith.maximumf %7, %3 : vector<8x128xf32>
    %c0_8 = arith.constant 0 : index
    %c0_9 = arith.constant 0 : index
    %9 = vector.load %arg6[%c0_8, %c0_9] : memref<8x128xf32, #tpu.memory_space<vmem>>, vector<8x128xf32>
    tpu.vector_store %arg6[%c0_8, %c0_9], %8 {strides = array<i32>} : memref<8x128xf32, #tpu.memory_space<vmem>>, vector<8x128xf32>,
    %c0_10 = arith.constant 0 : index
    %c128 = arith.constant 128 : index
    %10 = vector.load %arg2[%c0_10, %c128] : memref<8x256xf32, #tpu.memory_space<vmem>>, vector<8x128xf32>
    %c0_11 = arith.constant 0 : index
    %c0_12 = arith.constant 0 : index
    %11 = vector.load %arg5[%c0_11, %c0_12] : memref<8x128xf32, #tpu.memory_space<vmem>>, vector<8x128xf32>
    %12 = arith.addf %11, %10 : vector<8x128xf32>
    %c0_13 = arith.constant 0 : index
    %c0_14 = arith.constant 0 : index
    %13 = vector.load %arg5[%c0_13, %c0_14] : memref<8x128xf32, #tpu.memory_space<vmem>>, vector<8x128xf32>
    tpu.vector_store %arg5[%c0_13, %c0_14], %12 {strides = array<i32>} : memref<8x128xf32, #tpu.memory_space<vmem>>, vector<8x128xf32>,
    %c0_15 = arith.constant 0 : index
    %c0_16 = arith.constant 0 : index
    %14 = vector.load %arg6[%c0_15, %c0_16] : memref<8x128xf32, #tpu.memory_space<vmem>>, vector<8x128xf32>
    %15 = arith.maximumf %14, %10 : vector<8x128xf32>
    %c0_17 = arith.constant 0 : index
    %c0_18 = arith.constant 0 : index
    %16 = vector.load %arg6[%c0_17, %c0_18] : memref<8x128xf32, #tpu.memory_space<vmem>>, vector<8x128xf32>
    tpu.vector_store %arg6[%c0_17, %c0_18], %15 {strides = array<i32>} : memref<8x128xf32, #tpu.memory_space<vmem>>, vector<8x128xf32>,
    %c0_i32_19 = arith.constant 0 : i32
    %17 = arith.cmpi eq, %arg1, %c0_i32_19 : i32
    %18 = arith.extui %17 : i1 to i32
    %c0_i32_20 = arith.constant 0 : i32
    %19 = arith.cmpi ne, %18, %c0_i32_20 : i32
    scf.if %19 {
      %c0_21 = arith.constant 0 : index
      %c0_22 = arith.constant 0 : index
      %20 = vector.load %arg5[%c0_21, %c0_22] : memref<8x128xf32, #tpu.memory_space<vmem>>, vector<8x128xf32>
      %cst = arith.constant dense<0.000000e+00> : vector<8xf32>
      %21 = vector.multi_reduction <add>, %20, %cst [1] : vector<8x128xf32> to vector<8xf32>
      %22 = vector.shape_cast %21 : vector<8xf32> to vector<8x1xf32>
      %c0_23 = arith.constant 0 : index
      %c0_24 = arith.constant 0 : index
      %23 = vector.load %arg3[%c0_23, %c0_24] : memref<8x1xf32, #tpu.memory_space<vmem>>, vector<8x1xf32>
      tpu.vector_store %arg3[%c0_23, %c0_24], %22 {strides = array<i32>} : memref<8x1xf32, #tpu.memory_space<vmem>>, vector<8x1xf32>,
      %c0_25 = arith.constant 0 : index
      %c0_26 = arith.constant 0 : index
      %24 = vector.load %arg6[%c0_25, %c0_26] : memref<8x128xf32, #tpu.memory_space<vmem>>, vector<8x128xf32>
      %cst_27 = arith.constant dense<0xFF800000> : vector<8xf32>
      %25 = vector.multi_reduction <maximumf>, %24, %cst_27 [1] : vector<8x128xf32> to vector<8xf32>
      %26 = vector.shape_cast %25 : vector<8xf32> to vector<8x1xf32>
      %c0_28 = arith.constant 0 : index
      %c0_29 = arith.constant 0 : index
      %27 = vector.load %arg4[%c0_28, %c0_29] : memref<8x1xf32, #tpu.memory_space<vmem>>, vector<8x1xf32>
      tpu.vector_store %arg4[%c0_28, %c0_29], %26 {strides = array<i32>} : memref<8x1xf32, #tpu.memory_space<vmem>>, vector<8x1xf32>,
    } else {
    }
    return
  }
  func.func @transform_0(%arg0: i32, %arg1: i32) -> (i32, i32) {
    %c0_i32 = arith.constant 0 : i32
    return %arg0, %arg1 : i32, i32
  }
  func.func @transform_1(%arg0: i32, %arg1: i32) -> (i32, i32) {
    %c0_i32 = arith.constant 0 : i32
    %c0_i32_0 = arith.constant 0 : i32
    return %arg0, %c0_i32 : i32, i32
  }
  func.func @transform_2(%arg0: i32, %arg1: i32) -> (i32, i32) {
    %c0_i32 = arith.constant 0 : i32
    %c0_i32_0 = arith.constant 0 : i32
    return %arg0, %c0_i32 : i32, i32
  }
}

</mosaic_0001>

<llo_original>
// kernel: channel_attention.1
$region0: #{channel_attention.1}
  #allocation0 [shape = 'u32[]', space=smem, size = 0x4, offset = 0x4, fixed_abs, tag = 'smem constant byte address 0x4 - core index']
  #allocation1 [shape = 'u32[72,128]{1,0:T(1,128)}', space=vmem, size = 0x9000, scoped, tag = 'internal scratch']
  #allocation2 [shape = 'f32[8,128]{1,0:T(8,128)}', space=vmem, size = 0x1000, scoped, tag = 'scratch operand']
  #allocation3 [shape = 'f32[8,128]{1,0:T(8,128)}', space=vmem, size = 0x1000, scoped, tag = 'scratch operand']
  %s0 = inlined_call_operand.vmem [shape: f32[8,256], index: 0, kind: input, shape index: {}]
  %s1 = inlined_call_operand.vmem [shape: f32[8,1], index: 1, kind: output, shape index: {0}]
  %s2 = inlined_call_operand.vmem [shape: f32[8,1], index: 2, kind: output, shape index: {1}]
  %3 = xla_tuple %s1, %s2
  %s4 = sld [smem:[#allocation0]]
  $region30: #{channel_attention.1} parent=0
    _
  %s6 = ssub.s32 1, %s4
  %s7 = scalar_select 0, %s6, %s4
  // Predicated region
  $region2: #{channel_attention.1} parent=0 // pred_check
    _
  $region3: #{channel_attention.1} parent=0 // pred_check_branch
    %9 = sbr.rel (0) target = $region5
  $region4: #{channel_attention.1} parent=0 // pred_region
    _
  $region5: #{channel_attention.1} parent=0 // pred_fallthru
    _
  %p10 = scmp.eq.s32.totalorder 0, 0
  // Predicated region
  $region6: #{channel_attention.1} parent=0 // pred_check
    %p11 = pneg %p10
  $region7: #{channel_attention.1} parent=0 // pred_check_branch
    %13 = sbr.rel (%p11) target = $region9
  $region8: #{channel_attention.1} parent=0 // pred_region
    %14 = vst [vmem:[#allocation2] sm:$0xff] 0.0
    %15 = vst [vmem:[#allocation3] sm:$0xff] -inf
  $region9: #{channel_attention.1} parent=0 // pred_fallthru
    _
  %v16 = vld [vmem:[%s0] sm:$0xff]
  %v17 = vld [vmem:[#allocation2] sm:$0xff]
  %v18 = vadd.f32 %v17, %v16
  %19 = vst [vmem:[#allocation2] sm:$0xff] %v18
  %v20 = vld [vmem:[#allocation3] sm:$0xff]
  %v21 = vmax.f32 %v20, %v16
  %22 = vst [vmem:[#allocation3] sm:$0xff] %v21
  %v23 = vld [vmem:[%s0 + $0x8] sm:$0xff]
  %v24 = vld [vmem:[#allocation2] sm:$0xff]
  %v25 = vadd.f32 %v24, %v23
  %26 = vst [vmem:[#allocation2] sm:$0xff] %v25
  %v27 = vld [vmem:[#allocation3] sm:$0xff]
  %v28 = vmax.f32 %v27, %v23
  %29 = vst [vmem:[#allocation3] sm:$0xff] %v28
  // Predicated region
  $region10: #{channel_attention.1} parent=0 // pred_check
    %p30 = pneg %p10
  $region11: #{channel_attention.1} parent=0 // pred_check_branch
    %32 = sbr.rel (%p30) target = $region13
  $region12: #{channel_attention.1} parent=0 // pred_region
    %v33 = vld [vmem:[#allocation2] sm:$0xff]
    %34 = vadd.xlane.f32.xlu0 %v33
    %v35 = vpop.xlane.xlu0 %34
    %vm36 = vcmask 7168
    %37 = vst.msk [vmem:[%s1] sm:$0xff] %vm36, %v35
    %v38 = vld [vmem:[#allocation3] sm:$0xff]
    %39 = vmax.xlane.f32.xlu0 %v38
    %v40 = vpop.xlane.xlu0 %39
    %41 = vst.msk [vmem:[%s2] sm:$0xff] %vm36, %v40
  $region13: #{channel_attention.1} parent=0 // pred_fallthru
    _
  // Predicated region
  $region14: #{channel_attention.1} parent=0 // pred_check
    _
  $region15: #{channel_attention.1} parent=0 // pred_check_branch
    %43 = sbr.rel (0) target = $region17
  $region16: #{channel_attention.1} parent=0 // pred_region
    _
  $region17: #{channel_attention.1} parent=0 // pred_fallthru
    _
  // Predicated region
  $region18: #{channel_attention.1} parent=0 // pred_check
    _
  $region19: #{channel_attention.1} parent=0 // pred_check_branch
    %45 = sbr.rel (0) target = $region21
  $region20: #{channel_attention.1} parent=0 // pred_region
    _
  $region21: #{channel_attention.1} parent=0 // pred_fallthru
    _
  // Predicated region
  $region22: #{channel_attention.1} parent=0 // pred_check
    _
  $region23: #{channel_attention.1} parent=0 // pred_check_branch
    %47 = sbr.rel (0) target = $region25
  $region24: #{channel_attention.1} parent=0 // pred_region
    _
  $region25: #{channel_attention.1} parent=0 // pred_fallthru
    _
  // Predicated region
  $region26: #{channel_attention.1} parent=0 // pred_check
    _
  $region27: #{channel_attention.1} parent=0 // pred_check_branch
    %49 = sbr.rel (0) target = $region29
  $region28: #{channel_attention.1} parent=0 // pred_region
    _
  $region29: #{channel_attention.1} parent=0 // pred_fallthru
    _

</llo_original>
